<compile_context>
chip_gen: v5e
topology: v5e:2x2
jax: 0.10.0
libtpu: 0.0.40
codegen_flags: <defaults>
</compile_context>

<pallas_src>
import functools
import math

import jax
import jax.numpy as jnp
from jax import lax
from jax.experimental import pallas as pl
from jax.experimental.pallas import tpu as pltpu


def _head_attention(Qh, Kh, Vh, wo_h, in_dtype):
    """Single-head attention core.

    Qh/Kh/Vh: (S, hd) in the activation dtype (scale already folded into Qh).
    wo_h:     (hd, D) row-slice of the output projection for this head.
    Returns the (S, D) float32 partial contribution of this head (pre-bias).
    """
    # scores = Qh @ Kh^T: contract the trailing dim of both operands so no
    # K transpose is materialized.  f32 accumulation on the MXU.
    s = lax.dot_general(Qh, Kh, (((1,), (1,)), ((), ())),
                        preferred_element_type=jnp.float32)          # (S, S)
    # Numerically-stable exponentials (f32 VPU/EUP math).
    s = s - jnp.max(s, axis=-1, keepdims=True)
    e = jnp.exp(s)                                                    # (S, S)
    # Deferred normalization: PV matmul on unnormalized exponentials, then
    # rescale the (S, hd) context rows -> O(S*hd) instead of O(S*S) multiply.
    ctx = jnp.dot(e.astype(in_dtype), Vh,
                  preferred_element_type=jnp.float32)                 # (S, hd)
    inv = pl.reciprocal(jnp.sum(e, axis=-1, keepdims=True), approx=True)
    ctx = ctx * inv
    # Head-merge folded into the output projection: this head's row-slice.
    return jnp.dot(ctx.astype(in_dtype), wo_h,
                   preferred_element_type=jnp.float32)                # (S, D)


def mha_kernel(q_ref, k_ref, v_ref,
               wq_ref, bq_ref, wk_ref, bk_ref, wv_ref, bv_ref,
               wo_ref, bo_ref,
               o_ref, acc_ref):
    """General (cross-attention) path: one (batch, head) pair per grid step."""
    h = pl.program_id(1)
    q = q_ref[0]   # (S, D)
    k = k_ref[0]
    v = v_ref[0]
    in_dtype = q.dtype

    # Per-head projections (2-D MXU matmuls, f32 accumulation).  The
    # 1/sqrt(head_dim) scale is already folded into wq/bq by the wrapper.
    Qh = (jnp.dot(q, wq_ref[0], preferred_element_type=jnp.float32)
          + bq_ref[0]).astype(in_dtype)            # (S, hd)
    Kh = (jnp.dot(k, wk_ref[0], preferred_element_type=jnp.float32)
          + bk_ref[0]).astype(in_dtype)            # (S, hd)
    Vh = (jnp.dot(v, wv_ref[0], preferred_element_type=jnp.float32)
          + bv_ref[0]).astype(in_dtype)            # (S, hd)

    part = _head_attention(Qh, Kh, Vh, wo_ref[0], in_dtype)

    @pl.when(h == 0)
    def _():
        acc_ref[...] = jnp.zeros_like(acc_ref)

    acc_ref[...] += part

    @pl.when(h == pl.num_programs(1) - 1)
    def _():
        o_ref[0] = (acc_ref[...] + bo_ref[...]).astype(o_ref.dtype)


def mha_self_kernel(x_ref, wqkv_ref, bqkv_ref, wo_ref, bo_ref,
                    o_ref, acc_ref, *, head_dim):
    """Self-attention fast path: fused per-head QKV projection."""
    h = pl.program_id(1)
    x = x_ref[0]   # (S, D)
    in_dtype = x.dtype
    hd = head_dim

    # One (S, D) @ (D, 3*hd) matmul + one bias add instead of three.
    qkv = (jnp.dot(x, wqkv_ref[0], preferred_element_type=jnp.float32)
           + bqkv_ref[0]).astype(in_dtype)         # (S, 3*hd)
    Qh = qkv[:, 0 * hd:1 * hd]
    Kh = qkv[:, 1 * hd:2 * hd]
    Vh = qkv[:, 2 * hd:3 * hd]

    part = _head_attention(Qh, Kh, Vh, wo_ref[0], in_dtype)

    @pl.when(h == 0)
    def _():
        acc_ref[...] = jnp.zeros_like(acc_ref)

    acc_ref[...] += part

    @pl.when(h == pl.num_programs(1) - 1)
    def _():
        o_ref[0] = (acc_ref[...] + bo_ref[...]).astype(o_ref.dtype)


def multi_head_attention(query, key, value, params, *, num_heads):
    """query/key/value: [B, S, D]. params: dict of weights/biases (f32)."""
    B, S, D = query.shape
    assert D % num_heads == 0, "d_model must be divisible by num_heads"
    H = num_heads
    hd = D // H
    scale = 1.0 / math.sqrt(float(hd))
    dtype = query.dtype

    def head_cols(w):    # (D, D) -> (H, D, hd): head h = output columns h*hd:(h+1)*hd
        return jnp.transpose(w.reshape(D, H, hd), (1, 0, 2))

    def head_bias(b):    # (1, D) -> (H, 1, hd)
        return b.reshape(H, hd)[:, None, :]

    # Host-side (free): fold the softmax scale into the query projection,
    # split weights per head, and cast to the activation dtype.
    wq = head_cols(params["wq"] * scale).astype(dtype)
    bq = head_bias(params["bq"] * scale).astype(dtype)
    wk = head_cols(params["wk"]).astype(dtype)
    bk = head_bias(params["bk"]).astype(dtype)
    wv = head_cols(params["wv"]).astype(dtype)
    bv = head_bias(params["bv"]).astype(dtype)
    wo = params["wo"].reshape(H, hd, D).astype(dtype)   # head h = input rows
    bo = params["bo"].astype(dtype)

    # BlockSpecs.  Sequence blocks are constant across the inner (head) axis,
    # so Pallas DMAs them once per batch element; weight blocks are per head.
    seq_spec = pl.BlockSpec((1, S, D), lambda b, h: (b, 0, 0))
    whd_spec = pl.BlockSpec((1, D, hd), lambda b, h: (h, 0, 0))
    bhd_spec = pl.BlockSpec((1, 1, hd), lambda b, h: (h, 0, 0))
    wo_spec = pl.BlockSpec((1, hd, D), lambda b, h: (h, 0, 0))
    bo_spec = pl.BlockSpec((1, D), lambda b, h: (0, 0))

    compiler_params = pltpu.CompilerParams(
        dimension_semantics=("parallel", "arbitrary"),
        vmem_limit_bytes=32 * 1024 * 1024)
    out_shape = jax.ShapeDtypeStruct((B, S, D), dtype)
    scratch_shapes = [pltpu.VMEM((S, D), jnp.float32)]   # f32 head accumulator

    self_attention = (query is key) and (query is value)

    if self_attention:
        # Fuse the three per-head projection weights into one (D, 3*hd) slab.
        wqkv = jnp.concatenate([wq, wk, wv], axis=-1)     # (H, D, 3*hd)
        bqkv = jnp.concatenate([bq, bk, bv], axis=-1)     # (H, 1, 3*hd)
        wqkv_spec = pl.BlockSpec((1, D, 3 * hd), lambda b, h: (h, 0, 0))
        bqkv_spec = pl.BlockSpec((1, 1, 3 * hd), lambda b, h: (h, 0, 0))
        kernel = functools.partial(mha_self_kernel, head_dim=hd)
        return pl.pallas_call(
            kernel,
            out_shape=out_shape,
            grid_spec=pltpu.PrefetchScalarGridSpec(
                num_scalar_prefetch=0,
                grid=(B, H),
                in_specs=[seq_spec, wqkv_spec, bqkv_spec, wo_spec, bo_spec],
                out_specs=seq_spec,
                scratch_shapes=scratch_shapes),
            compiler_params=compiler_params,
        )(query, wqkv, bqkv, wo, bo)

    return pl.pallas_call(
        mha_kernel,
        out_shape=out_shape,
        grid_spec=pltpu.PrefetchScalarGridSpec(
            num_scalar_prefetch=0,
            grid=(B, H),
            in_specs=[seq_spec, seq_spec, seq_spec,
                      whd_spec, bhd_spec, whd_spec, bhd_spec, whd_spec, bhd_spec,
                      wo_spec, bo_spec],
            out_specs=seq_spec,
            scratch_shapes=scratch_shapes),
        compiler_params=compiler_params,
    )(query, key, value, wq, bq, wk, bk, wv, bv, wo, bo)


def reference_mha(query, key, value, params, *, num_heads):
    """Pure-JAX reference mirroring the PyTorch forward (eval mode)."""
    B, S, D = query.shape
    hd = D // num_heads

    def lin(x, w, b):
        return x @ w + b[0]

    Q = lin(query, params["wq"], params["bq"]).reshape(B, S, num_heads, hd).transpose(0, 2, 1, 3)
    K = lin(key, params["wk"], params["bk"]).reshape(B, S, num_heads, hd).transpose(0, 2, 1, 3)
    V = lin(value, params["wv"], params["bv"]).reshape(B, S, num_heads, hd).transpose(0, 2, 1, 3)

    scores = jnp.einsum("bhqd,bhkd->bhqk", Q, K) / jnp.sqrt(jnp.float32(hd))
    attn = jax.nn.softmax(scores, axis=-1)
    attended = jnp.einsum("bhqk,bhkd->bhqd", attn, V)
    attended = attended.transpose(0, 2, 1, 3).reshape(B, S, D)
    return lin(attended, params["wo"], params["bo"])


def init_params(key, d_model):
    # nn.Linear-style init: U(-1/sqrt(fan_in), 1/sqrt(fan_in)), deterministic seed.
    bound = 1.0 / math.sqrt(d_model)
    names = ["wq", "bq", "wk", "bk", "wv", "bv", "wo", "bo"]
    keys = jax.random.split(key, len(names))
    params = {}
    for n, k in zip(names, keys):
        shape = (d_model, d_model) if n.startswith("w") else (1, d_model)
        params[n] = jax.random.uniform(k, shape, jnp.float32, -bound, bound)
    return params


if __name__ == "__main__":
    B, S, D, H = 2, 8, 32, 4  # batch, seq, d_model, num_heads

    root = jax.random.PRNGKey(0)
    kq, kk, kv, kp = jax.random.split(root, 4)
    query = jax.random.normal(kq, (B, S, D), jnp.float32)
    key_in = jax.random.normal(kk, (B, S, D), jnp.float32)
    value = jax.random.normal(kv, (B, S, D), jnp.float32)
    params = init_params(kp, D)

    # General (cross-attention) path: three distinct inputs, as in the module.
    out = jax.block_until_ready(
        multi_head_attention(query, key_in, value, params, num_heads=H))
    ref = reference_mha(query, key_in, value, params, num_heads=H)
    assert out.shape == (B, S, D)
    # Tolerance loosened to 1e-3: the softmax denominator uses the EUP approx
    # reciprocal (~2^-12 relative error).
    assert jnp.allclose(out, ref, atol=1e-3, rtol=1e-3), "cross-attn mismatch"

    # Self-attention fast path (fused QKV projection, single input DMA).
    out_sa = jax.block_until_ready(
        multi_head_attention(query, query, query, params, num_heads=H))
    ref_sa = reference_mha(query, query, query, params, num_heads=H)
    assert jnp.allclose(out_sa, ref_sa, atol=1e-3, rtol=1e-3), "self-attn mismatch"

    print("KERNEL_OK")
</pallas_src>

<mosaic_0001>
module attributes {stable_mosaic.version = 11 : i64} {
  func.func @mha_kernel(%arg0: i32, %arg1: i32, %arg2: memref<1x8x32xf32, #tpu.memory_space<vmem>>, %arg3: memref<1x8x32xf32, #tpu.memory_space<vmem>>, %arg4: memref<1x8x32xf32, #tpu.memory_space<vmem>>, %arg5: memref<1x32x8xf32, #tpu.memory_space<vmem>>, %arg6: memref<1x1x8xf32, #tpu.memory_space<vmem>>, %arg7: memref<1x32x8xf32, #tpu.memory_space<vmem>>, %arg8: memref<1x1x8xf32, #tpu.memory_space<vmem>>, %arg9: memref<1x32x8xf32, #tpu.memory_space<vmem>>, %arg10: memref<1x1x8xf32, #tpu.memory_space<vmem>>, %arg11: memref<1x8x32xf32, #tpu.memory_space<vmem>>, %arg12: memref<1x32xf32, #tpu.memory_space<vmem>>, %arg13: memref<1x8x32xf32, #tpu.memory_space<vmem>>, %arg14: memref<8x32xf32, #tpu.memory_space<vmem>>) attributes {dimension_semantics = [#tpu.dimension_semantics<parallel>, #tpu.dimension_semantics<arbitrary>], iteration_bounds = array<i64: 2, 4>, scalar_prefetch = 0 : i64, scratch_operands = 1 : i64, tpu.core_type = #tpu.core_type<tc>, window_params = [{transform_indices = @transform_0, window_bounds = array<i64: 1, 8, 32>}, {transform_indices = @transform_1, window_bounds = array<i64: 1, 8, 32>}, {transform_indices = @transform_2, window_bounds = array<i64: 1, 8, 32>}, {transform_indices = @transform_3, window_bounds = array<i64: 1, 32, 8>}, {transform_indices = @transform_4, window_bounds = array<i64: 1, 1, 8>}, {transform_indices = @transform_5, window_bounds = array<i64: 1, 32, 8>}, {transform_indices = @transform_6, window_bounds = array<i64: 1, 1, 8>}, {transform_indices = @transform_7, window_bounds = array<i64: 1, 32, 8>}, {transform_indices = @transform_8, window_bounds = array<i64: 1, 1, 8>}, {transform_indices = @transform_9, window_bounds = array<i64: 1, 8, 32>}, {pipeline_mode = #tpu.pipeline_mode<synchronous>, transform_indices = @transform_10, window_bounds = array<i64: 1, 32>}, {transform_indices = @transform_11, window_bounds = array<i64: 1, 8, 32>}]} {
    %c0 = arith.constant 0 : index
    %c0_0 = arith.constant 0 : index
    %c0_1 = arith.constant 0 : index
    %0 = vector.load %arg2[%c0, %c0_0, %c0_1] : memref<1x8x32xf32, #tpu.memory_space<vmem>>, vector<1x8x32xf32>
    %1 = vector.shape_cast %0 : vector<1x8x32xf32> to vector<8x32xf32>
    %c0_2 = arith.constant 0 : index
    %c0_3 = arith.constant 0 : index
    %c0_4 = arith.constant 0 : index
    %2 = vector.load %arg3[%c0_2, %c0_3, %c0_4] : memref<1x8x32xf32, #tpu.memory_space<vmem>>, vector<1x8x32xf32>
    %3 = vector.shape_cast %2 : vector<1x8x32xf32> to vector<8x32xf32>
    %c0_5 = arith.constant 0 : index
    %c0_6 = arith.constant 0 : index
    %c0_7 = arith.constant 0 : index
    %4 = vector.load %arg4[%c0_5, %c0_6, %c0_7] : memref<1x8x32xf32, #tpu.memory_space<vmem>>, vector<1x8x32xf32>
    %5 = vector.shape_cast %4 : vector<1x8x32xf32> to vector<8x32xf32>
    %c0_8 = arith.constant 0 : index
    %c0_9 = arith.constant 0 : index
    %c0_10 = arith.constant 0 : index
    %6 = vector.load %arg5[%c0_8, %c0_9, %c0_10] : memref<1x32x8xf32, #tpu.memory_space<vmem>>, vector<1x32x8xf32>
    %7 = vector.shape_cast %6 : vector<1x32x8xf32> to vector<32x8xf32>
    %cst = arith.constant dense<0.000000e+00> : vector<8x8xf32>
    %8 = tpu.matmul %1, %7, %cst {dimension_numbers = #tpu.dot_dimension_numbers<[1], [0], [0], [1], [0, 0, 1, 1], [], []>} : vector<8x32xf32>, vector<32x8xf32>, vector<8x8xf32> -> vector<8x8xf32>
    %c0_11 = arith.constant 0 : index
    %c0_12 = arith.constant 0 : index
    %c0_13 = arith.constant 0 : index
    %9 = vector.load %arg6[%c0_11, %c0_12, %c0_13] : memref<1x1x8xf32, #tpu.memory_space<vmem>>, vector<1x1x8xf32>
    %10 = vector.shape_cast %9 : vector<1x1x8xf32> to vector<1x8xf32>
    %11 = vector.broadcast %10 : vector<1x8xf32> to vector<8x8xf32>
    %12 = arith.addf %8, %11 : vector<8x8xf32>
    %c0_14 = arith.constant 0 : index
    %c0_15 = arith.constant 0 : index
    %c0_16 = arith.constant 0 : index
    %13 = vector.load %arg7[%c0_14, %c0_15, %c0_16] : memref<1x32x8xf32, #tpu.memory_space<vmem>>, vector<1x32x8xf32>
    %14 = vector.shape_cast %13 : vector<1x32x8xf32> to vector<32x8xf32>
    %cst_17 = arith.constant dense<0.000000e+00> : vector<8x8xf32>
    %15 = tpu.matmul %3, %14, %cst_17 {dimension_numbers = #tpu.dot_dimension_numbers<[1], [0], [0], [1], [0, 0, 1, 1], [], []>} : vector<8x32xf32>, vector<32x8xf32>, vector<8x8xf32> -> vector<8x8xf32>
    %c0_18 = arith.constant 0 : index
    %c0_19 = arith.constant 0 : index
    %c0_20 = arith.constant 0 : index
    %16 = vector.load %arg8[%c0_18, %c0_19, %c0_20] : memref<1x1x8xf32, #tpu.memory_space<vmem>>, vector<1x1x8xf32>
    %17 = vector.shape_cast %16 : vector<1x1x8xf32> to vector<1x8xf32>
    %18 = vector.broadcast %17 : vector<1x8xf32> to vector<8x8xf32>
    %19 = arith.addf %15, %18 : vector<8x8xf32>
    %c0_21 = arith.constant 0 : index
    %c0_22 = arith.constant 0 : index
    %c0_23 = arith.constant 0 : index
    %20 = vector.load %arg9[%c0_21, %c0_22, %c0_23] : memref<1x32x8xf32, #tpu.memory_space<vmem>>, vector<1x32x8xf32>
    %21 = vector.shape_cast %20 : vector<1x32x8xf32> to vector<32x8xf32>
    %cst_24 = arith.constant dense<0.000000e+00> : vector<8x8xf32>
    %22 = tpu.matmul %5, %21, %cst_24 {dimension_numbers = #tpu.dot_dimension_numbers<[1], [0], [0], [1], [0, 0, 1, 1], [], []>} : vector<8x32xf32>, vector<32x8xf32>, vector<8x8xf32> -> vector<8x8xf32>
    %c0_25 = arith.constant 0 : index
    %c0_26 = arith.constant 0 : index
    %c0_27 = arith.constant 0 : index
    %23 = vector.load %arg10[%c0_25, %c0_26, %c0_27] : memref<1x1x8xf32, #tpu.memory_space<vmem>>, vector<1x1x8xf32>
    %24 = vector.shape_cast %23 : vector<1x1x8xf32> to vector<1x8xf32>
    %25 = vector.broadcast %24 : vector<1x8xf32> to vector<8x8xf32>
    %26 = arith.addf %22, %25 : vector<8x8xf32>
    %c0_28 = arith.constant 0 : index
    %c0_29 = arith.constant 0 : index
    %c0_30 = arith.constant 0 : index
    %27 = vector.load %arg11[%c0_28, %c0_29, %c0_30] : memref<1x8x32xf32, #tpu.memory_space<vmem>>, vector<1x8x32xf32>
    %28 = vector.shape_cast %27 : vector<1x8x32xf32> to vector<8x32xf32>
    %cst_31 = arith.constant dense<0.000000e+00> : vector<8x8xf32>
    %29 = tpu.matmul %12, %19, %cst_31 {dimension_numbers = #tpu.dot_dimension_numbers<[1], [1], [0], [0], [0, 0, 1, 0], [], []>} : vector<8x8xf32>, vector<8x8xf32>, vector<8x8xf32> -> vector<8x8xf32>
    %cst_32 = arith.constant dense<0xFF800000> : vector<8xf32>
    %30 = vector.multi_reduction <maximumf>, %29, %cst_32 [1] : vector<8x8xf32> to vector<8xf32>
    %31 = vector.shape_cast %30 : vector<8xf32> to vector<8x1xf32>
    %32 = vector.broadcast %31 : vector<8x1xf32> to vector<8x8xf32>
    %33 = arith.subf %29, %32 : vector<8x8xf32>
    %34 = math.exp %33 : vector<8x8xf32>
    %cst_33 = arith.constant dense<0.000000e+00> : vector<8x8xf32>
    %35 = tpu.matmul %34, %26, %cst_33 {dimension_numbers = #tpu.dot_dimension_numbers<[1], [0], [0], [1], [0, 0, 1, 1], [], []>} : vector<8x8xf32>, vector<8x8xf32>, vector<8x8xf32> -> vector<8x8xf32>
    %cst_34 = arith.constant dense<0.000000e+00> : vector<8xf32>
    %36 = vector.multi_reduction <add>, %34, %cst_34 [1] : vector<8x8xf32> to vector<8xf32>
    %37 = vector.shape_cast %36 : vector<8xf32> to vector<8x1xf32>
    %38 = tpu.reciprocal %37 {approx = true} : vector<8x1xf32> -> vector<8x1xf32>
    %39 = vector.broadcast %38 : vector<8x1xf32> to vector<8x8xf32>
    %40 = arith.mulf %35, %39 : vector<8x8xf32>
    %cst_35 = arith.constant dense<0.000000e+00> : vector<8x32xf32>
    %41 = tpu.matmul %40, %28, %cst_35 {dimension_numbers = #tpu.dot_dimension_numbers<[1], [0], [0], [1], [0, 0, 1, 1], [], []>} : vector<8x8xf32>, vector<8x32xf32>, vector<8x32xf32> -> vector<8x32xf32>
    %c0_i32 = arith.constant 0 : i32
    %42 = arith.cmpi eq, %arg1, %c0_i32 : i32
    %43 = arith.extui %42 : i1 to i32
    %c0_i32_36 = arith.constant 0 : i32
    %44 = arith.cmpi ne, %43, %c0_i32_36 : i32
    scf.if %44 {
      %cst_42 = arith.constant 0.000000e+00 : f32
      %51 = vector.broadcast %cst_42 : f32 to vector<8x32xf32>
      %c0_43 = arith.constant 0 : index
      %c0_44 = arith.constant 0 : index
      %52 = vector.load %arg14[%c0_43, %c0_44] : memref<8x32xf32, #tpu.memory_space<vmem>>, vector<8x32xf32>
      tpu.vector_store %arg14[%c0_43, %c0_44], %51 {strides = array<i32>} : memref<8x32xf32, #tpu.memory_space<vmem>>, vector<8x32xf32>,
    } else {
    }
    %c0_37 = arith.constant 0 : index
    %c0_38 = arith.constant 0 : index
    %45 = vector.load %arg14[%c0_37, %c0_38] : memref<8x32xf32, #tpu.memory_space<vmem>>, vector<8x32xf32>
    %46 = arith.addf %45, %41 : vector<8x32xf32>
    %c0_39 = arith.constant 0 : index
    %c0_40 = arith.constant 0 : index
    %47 = vector.load %arg14[%c0_39, %c0_40] : memref<8x32xf32, #tpu.memory_space<vmem>>, vector<8x32xf32>
    tpu.vector_store %arg14[%c0_39, %c0_40], %46 {strides = array<i32>} : memref<8x32xf32, #tpu.memory_space<vmem>>, vector<8x32xf32>,
    %c3_i32 = arith.constant 3 : i32
    %48 = arith.cmpi eq, %arg1, %c3_i32 : i32
    %49 = arith.extui %48 : i1 to i32
    %c0_i32_41 = arith.constant 0 : i32
    %50 = arith.cmpi ne, %49, %c0_i32_41 : i32
    scf.if %50 {
      %c0_42 = arith.constant 0 : index
      %c0_43 = arith.constant 0 : index
      %51 = vector.load %arg14[%c0_42, %c0_43] : memref<8x32xf32, #tpu.memory_space<vmem>>, vector<8x32xf32>
      %c0_44 = arith.constant 0 : index
      %c0_45 = arith.constant 0 : index
      %52 = vector.load %arg12[%c0_44, %c0_45] : memref<1x32xf32, #tpu.memory_space<vmem>>, vector<1x32xf32>
      %53 = vector.broadcast %52 : vector<1x32xf32> to vector<8x32xf32>
      %54 = arith.addf %51, %53 : vector<8x32xf32>
      %c0_46 = arith.constant 0 : index
      %c0_47 = arith.constant 0 : index
      %c0_48 = arith.constant 0 : index
      %55 = vector.load %arg13[%c0_46, %c0_47, %c0_48] : memref<1x8x32xf32, #tpu.memory_space<vmem>>, vector<1x8x32xf32>
      %56 = vector.shape_cast %55 : vector<1x8x32xf32> to vector<8x32xf32>
      %57 = vector.shape_cast %54 : vector<8x32xf32> to vector<1x8x32xf32>
      tpu.vector_store %arg13[%c0_46, %c0_47, %c0_48], %57 {strides = array<i32>} : memref<1x8x32xf32, #tpu.memory_space<vmem>>, vector<1x8x32xf32>,
    } else {
    }
    return
  }
  func.func @transform_0(%arg0: i32, %arg1: i32) -> (i32, i32, i32) {
    %c0_i32 = arith.constant 0 : i32
    %c0_i32_0 = arith.constant 0 : i32
    %c0_i32_1 = arith.constant 0 : i32
    return %arg0, %c0_i32, %c0_i32_0 : i32, i32, i32
  }
  func.func @transform_1(%arg0: i32, %arg1: i32) -> (i32, i32, i32) {
    %c0_i32 = arith.constant 0 : i32
    %c0_i32_0 = arith.constant 0 : i32
    %c0_i32_1 = arith.constant 0 : i32
    return %arg0, %c0_i32, %c0_i32_0 : i32, i32, i32
  }
  func.func @transform_2(%arg0: i32, %arg1: i32) -> (i32, i32, i32) {
    %c0_i32 = arith.constant 0 : i32
    %c0_i32_0 = arith.constant 0 : i32
    %c0_i32_1 = arith.constant 0 : i32
    return %arg0, %c0_i32, %c0_i32_0 : i32, i32, i32
  }
  func.func @transform_3(%arg0: i32, %arg1: i32) -> (i32, i32, i32) {
    %c0_i32 = arith.constant 0 : i32
    %c0_i32_0 = arith.constant 0 : i32
    %c0_i32_1 = arith.constant 0 : i32
    return %arg1, %c0_i32, %c0_i32_0 : i32, i32, i32
  }
  func.func @transform_4(%arg0: i32, %arg1: i32) -> (i32, i32, i32) {
    %c0_i32 = arith.constant 0 : i32
    %c0_i32_0 = arith.constant 0 : i32
    %c0_i32_1 = arith.constant 0 : i32
    return %arg1, %c0_i32, %c0_i32_0 : i32, i32, i32
  }
  func.func @transform_5(%arg0: i32, %arg1: i32) -> (i32, i32, i32) {
    %c0_i32 = arith.constant 0 : i32
    %c0_i32_0 = arith.constant 0 : i32
    %c0_i32_1 = arith.constant 0 : i32
    return %arg1, %c0_i32, %c0_i32_0 : i32, i32, i32
  }
  func.func @transform_6(%arg0: i32, %arg1: i32) -> (i32, i32, i32) {
    %c0_i32 = arith.constant 0 : i32
    %c0_i32_0 = arith.constant 0 : i32
    %c0_i32_1 = arith.constant 0 : i32
    return %arg1, %c0_i32, %c0_i32_0 : i32, i32, i32
  }
  func.func @transform_7(%arg0: i32, %arg1: i32) -> (i32, i32, i32) {
    %c0_i32 = arith.constant 0 : i32
    %c0_i32_0 = arith.constant 0 : i32
    %c0_i32_1 = arith.constant 0 : i32
    return %arg1, %c0_i32, %c0_i32_0 : i32, i32, i32
  }
  func.func @transform_8(%arg0: i32, %arg1: i32) -> (i32, i32, i32) {
    %c0_i32 = arith.constant 0 : i32
    %c0_i32_0 = arith.constant 0 : i32
    %c0_i32_1 = arith.constant 0 : i32
    return %arg1, %c0_i32, %c0_i32_0 : i32, i32, i32
  }
  func.func @transform_9(%arg0: i32, %arg1: i32) -> (i32, i32, i32) {
    %c0_i32 = arith.constant 0 : i32
    %c0_i32_0 = arith.constant 0 : i32
    %c0_i32_1 = arith.constant 0 : i32
    return %arg1, %c0_i32, %c0_i32_0 : i32, i32, i32
  }
  func.func @transform_10(%arg0: i32, %arg1: i32) -> (i32, i32) {
    %c0_i32 = arith.constant 0 : i32
    %c0_i32_0 = arith.constant 0 : i32
    %c0_i32_1 = arith.constant 0 : i32
    return %c0_i32, %c0_i32_0 : i32, i32
  }
  func.func @transform_11(%arg0: i32, %arg1: i32) -> (i32, i32, i32) {
    %c0_i32 = arith.constant 0 : i32
    %c0_i32_0 = arith.constant 0 : i32
    %c0_i32_1 = arith.constant 0 : i32
    return %arg0, %c0_i32, %c0_i32_0 : i32, i32, i32
  }
}

</mosaic_0001>

<llo_original>
// kernel: tpu_custom_call.1
$region0: #{tpu_custom_call.1}
  #allocation0 [shape = 'u32[]', space=smem, size = 0x4, offset = 0x4, fixed_abs, tag = 'smem constant byte address 0x4 - core index']
  #allocation1 [shape = 'u32[72,128]{1,0:T(1,128)}', space=vmem, size = 0x9000, scoped, tag = 'internal scratch']
  #allocation2 [shape = 'f32[8,32]{1,0:T(8,128)}', space=vmem, size = 0x1000, scoped, tag = 'scratch operand']
  %s0 = inlined_call_operand.vmem [shape: f32[2,8,32], index: 0, kind: input, shape index: {}]
  %s1 = inlined_call_operand.vmem [shape: f32[2,8,32], index: 1, kind: input, shape index: {}]
  %s2 = inlined_call_operand.vmem [shape: f32[2,8,32], index: 2, kind: input, shape index: {}]
  %s3 = inlined_call_operand.vmem [shape: f32[4,32,8], index: 3, kind: input, shape index: {}]
  %s4 = inlined_call_operand.vmem [shape: f32[4,1,8], index: 4, kind: input, shape index: {}]
  %s5 = inlined_call_operand.vmem [shape: f32[4,32,8], index: 5, kind: input, shape index: {}]
  %s6 = inlined_call_operand.vmem [shape: f32[4,1,8], index: 6, kind: input, shape index: {}]
  %s7 = inlined_call_operand.vmem [shape: f32[4,32,8], index: 7, kind: input, shape index: {}]
  %s8 = inlined_call_operand.vmem [shape: f32[4,1,8], index: 8, kind: input, shape index: {}]
  %s9 = inlined_call_operand.vmem [shape: f32[4,8,32], index: 9, kind: input, shape index: {}]
  %s10 = inlined_call_operand.vmem [shape: f32[1,32], index: 10, kind: input, shape index: {}]
  %s11 = inlined_call_operand.hbm [shape: f32[2,8,32], index: 11, kind: output, shape index: {}]
  %s12 = sld [smem:[#allocation0]]
  $region85: #{tpu_custom_call.1} parent=0
    _
  %s14 = ssub.s32 1, %s12
  %s15 = scalar_select 0, %s14, %s12
  $region1: #{tpu_custom_call.1} parent=0
    #allocation3 [shape = 'u8[8192]{0}', space=vmem, size = 0x2000, scoped, tag = 'output window, operand 0']
    #allocation4 [shape = 's32[2]{0}', space=sflag, size = 0x8, scoped, tag = 'scoped memory for tpu_custom_call.1']
    %16 = vsyncpa [#allocation4], 0
    %s17 = scalar_lea.sflag [#allocation4], 1
    %18 = vsyncpa %s17, 0
    loop: start=0, step=1, limit=10
    $region2: #{tpu_custom_call.1} parent=1 // loop_pre_header
      _
    $region3: #{tpu_custom_call.1} parent=1 // loop_header
      %s20 = sphi 0, %s24
      %p21 = scmp.ge.s32.totalorder %s20, 10
      %s27 = sphi 0, %s39
      %s28 = sphi 0, %s35
      %s29 = sphi 0, %s27
      %s30 = sphi 0, %s28
      %s31 = sphi 0, %s29
      %s32 = sphi 0, %s30
      %s42 = sphi 0, %s44
      %s45 = sphi 0, %s42
      %s46 = sphi 0, %s45
      %s62 = sphi 0, %s46
      %s68 = sphi 0, %s70
      %s71 = sphi 0, %s68
      %s72 = sphi 0, %s71
      %s88 = sphi 0, %s72
      %s94 = sphi 0, %s96
      %s97 = sphi 0, %s94
      %s98 = sphi 0, %s97
      %s114 = sphi 0, %s98
      %s120 = sphi 0, %s122
      %s123 = sphi 0, %s120
      %s124 = sphi 0, %s123
      %s140 = sphi 0, %s124
      %s146 = sphi 0, %s148
      %s149 = sphi 0, %s146
      %s150 = sphi 0, %s149
      %s166 = sphi 0, %s150
      %s172 = sphi 0, %s174
      %s175 = sphi 0, %s172
      %s176 = sphi 0, %s175
      %s192 = sphi 0, %s176
      %s198 = sphi 0, %s200
      %s201 = sphi 0, %s198
      %s202 = sphi 0, %s201
      %s218 = sphi 0, %s202
      %s224 = sphi 0, %s226
      %s227 = sphi 0, %s224
      %s228 = sphi 0, %s227
      %s244 = sphi 0, %s228
      %s250 = sphi 0, %s252
      %s253 = sphi 0, %s250
      %s254 = sphi 0, %s253
      %s270 = sphi 0, %s254
      %s276 = sphi 0, %s278
      %s279 = sphi 0, %s276
      %s280 = sphi 0, %s279
      %s296 = sphi 0, %s280
      %s300 = sphi 0, %s300
      %s302 = sphi 0, %s300
      %s303 = sphi 0, %s302
      %s317 = sphi 0, %s303
      %s323 = sphi 0, %s325
      %s326 = sphi 0, %s323
      %s327 = sphi 0, %s326
      %s343 = sphi 0, %s327
    $region4: #{tpu_custom_call.1} parent=1 // loop_header_branch
      %23 = sbr.rel (%p21) target = $region8
    $region5: #{tpu_custom_call.1} parent=1 // loop_body
      %s25 = ssub.s32 %s20, 1
      %s26 = ssub.s32 %s20, 2
      %s33 = sadd.s32 1, %s28
      %p34 = scmp.ge.s32.totalorder %s33, 4
      %s35 = scalar_select %p34, 0, %s33
      %s36 = sadd.s32 1, %s27
      %s37 = scalar_select %p34, %s36, %s27
      %p38 = scmp.ge.s32.totalorder %s37, 2
      %s39 = scalar_select %p38, 0, %s37
      %s40 = ssub.s32 %s27, %s39
      %p41 = scmp.eq.s32.totalorder %s40, 0
      %s43 = sadd.s32 %s42, 1
      %s44 = scalar_select %p41, %s42, %s43
      %p47 = pneg %p41
      %p48 = scmp.eq.s32.totalorder %s20, 7
      %p49 = por %p47, %p48
      %p50 = scmp.ne.s32.totalorder %s42, %s45
      %p51 = scmp.eq.s32.totalorder %s20, 0
      %p52 = por %p50, %p51
      %p53 = scmp.ne.s32.totalorder %s42, %s45
      %p54 = scmp.eq.s32.totalorder %s25, 7
      %p55 = por %p53, %p54
      %p56 = scmp.ne.s32.totalorder %s45, %s46
      %p57 = scmp.eq.s32.totalorder %s25, 0
      %p58 = por %p56, %p57
      %p59 = scmp.ne.s32.totalorder %s45, %s46
      %p60 = scmp.eq.s32.totalorder %s26, 7
      %p61 = por %p59, %p60
      %p63 = scmp.ne.s32.totalorder %s46, %s62
      %p64 = scmp.eq.s32.totalorder %s26, 0
      %p65 = por %p63, %p64
      %s66 = ssub.s32 %s27, %s39
      %p67 = scmp.eq.s32.totalorder %s66, 0
      %s69 = sadd.s32 %s68, 1
      %s70 = scalar_select %p67, %s68, %s69
      %p73 = pneg %p67
      %p74 = scmp.eq.s32.totalorder %s20, 7
      %p75 = por %p73, %p74
      %p76 = scmp.ne.s32.totalorder %s68, %s71
      %p77 = scmp.eq.s32.totalorder %s20, 0
      %p78 = por %p76, %p77
      %p79 = scmp.ne.s32.totalorder %s68, %s71
      %p80 = scmp.eq.s32.totalorder %s25, 7
      %p81 = por %p79, %p80
      %p82 = scmp.ne.s32.totalorder %s71, %s72
      %p83 = scmp.eq.s32.totalorder %s25, 0
      %p84 = por %p82, %p83
      %p85 = scmp.ne.s32.totalorder %s71, %s72
      %p86 = scmp.eq.s32.totalorder %s26, 7
      %p87 = por %p85, %p86
      %p89 = scmp.ne.s32.totalorder %s72, %s88
      %p90 = scmp.eq.s32.totalorder %s26, 0
      %p91 = por %p89, %p90
      %s92 = ssub.s32 %s27, %s39
      %p93 = scmp.eq.s32.totalorder %s92, 0
      %s95 = sadd.s32 %s94, 1
      %s96 = scalar_select %p93, %s94, %s95
      %p99 = pneg %p93
      %p100 = scmp.eq.s32.totalorder %s20, 7
      %p101 = por %p99, %p100
      %p102 = scmp.ne.s32.totalorder %s94, %s97
      %p103 = scmp.eq.s32.totalorder %s20, 0
      %p104 = por %p102, %p103
      %p105 = scmp.ne.s32.totalorder %s94, %s97
      %p106 = scmp.eq.s32.totalorder %s25, 7
      %p107 = por %p105, %p106
      %p108 = scmp.ne.s32.totalorder %s97, %s98
      %p109 = scmp.eq.s32.totalorder %s25, 0
      %p110 = por %p108, %p109
      %p111 = scmp.ne.s32.totalorder %s97, %s98
      %p112 = scmp.eq.s32.totalorder %s26, 7
      %p113 = por %p111, %p112
      %p115 = scmp.ne.s32.totalorder %s98, %s114
      %p116 = scmp.eq.s32.totalorder %s26, 0
      %p117 = por %p115, %p116
      %s118 = ssub.s32 %s28, %s35
      %p119 = scmp.eq.s32.totalorder %s118, 0
      %s121 = sadd.s32 %s120, 1
      %s122 = scalar_select %p119, %s120, %s121
      %p125 = pneg %p119
      %p126 = scmp.eq.s32.totalorder %s20, 7
      %p127 = por %p125, %p126
      %p128 = scmp.ne.s32.totalorder %s120, %s123
      %p129 = scmp.eq.s32.totalorder %s20, 0
      %p130 = por %p128, %p129
      %p131 = scmp.ne.s32.totalorder %s120, %s123
      %p132 = scmp.eq.s32.totalorder %s25, 7
      %p133 = por %p131, %p132
      %p134 = scmp.ne.s32.totalorder %s123, %s124
      %p135 = scmp.eq.s32.totalorder %s25, 0
      %p136 = por %p134, %p135
      %p137 = scmp.ne.s32.totalorder %s123, %s124
      %p138 = scmp.eq.s32.totalorder %s26, 7
      %p139 = por %p137, %p138
      %p141 = scmp.ne.s32.totalorder %s124, %s140
      %p142 = scmp.eq.s32.totalorder %s26, 0
      %p143 = por %p141, %p142
      %s144 = ssub.s32 %s28, %s35
      %p145 = scmp.eq.s32.totalorder %s144, 0
      %s147 = sadd.s32 %s146, 1
      %s148 = scalar_select %p145, %s146, %s147
      %p151 = pneg %p145
      %p152 = scmp.eq.s32.totalorder %s20, 7
      %p153 = por %p151, %p152
      %p154 = scmp.ne.s32.totalorder %s146, %s149
      %p155 = scmp.eq.s32.totalorder %s20, 0
      %p156 = por %p154, %p155
      %p157 = scmp.ne.s32.totalorder %s146, %s149
      %p158 = scmp.eq.s32.totalorder %s25, 7
      %p159 = por %p157, %p158
      %p160 = scmp.ne.s32.totalorder %s149, %s150
      %p161 = scmp.eq.s32.totalorder %s25, 0
      %p162 = por %p160, %p161
      %p163 = scmp.ne.s32.totalorder %s149, %s150
      %p164 = scmp.eq.s32.totalorder %s26, 7
      %p165 = por %p163, %p164
      %p167 = scmp.ne.s32.totalorder %s150, %s166
      %p168 = scmp.eq.s32.totalorder %s26, 0
      %p169 = por %p167, %p168
      %s170 = ssub.s32 %s28, %s35
      %p171 = scmp.eq.s32.totalorder %s170, 0
      %s173 = sadd.s32 %s172, 1
      %s174 = scalar_select %p171, %s172, %s173
      %p177 = pneg %p171
      %p178 = scmp.eq.s32.totalorder %s20, 7
      %p179 = por %p177, %p178
      %p180 = scmp.ne.s32.totalorder %s172, %s175
      %p181 = scmp.eq.s32.totalorder %s20, 0
      %p182 = por %p180, %p181
      %p183 = scmp.ne.s32.totalorder %s172, %s175
      %p184 = scmp.eq.s32.totalorder %s25, 7
      %p185 = por %p183, %p184
      %p186 = scmp.ne.s32.totalorder %s175, %s176
      %p187 = scmp.eq.s32.totalorder %s25, 0
      %p188 = por %p186, %p187
      %p189 = scmp.ne.s32.totalorder %s175, %s176
      %p190 = scmp.eq.s32.totalorder %s26, 7
      %p191 = por %p189, %p190
      %p193 = scmp.ne.s32.totalorder %s176, %s192
      %p194 = scmp.eq.s32.totalorder %s26, 0
      %p195 = por %p193, %p194
      %s196 = ssub.s32 %s28, %s35
      %p197 = scmp.eq.s32.totalorder %s196, 0
      %s199 = sadd.s32 %s198, 1
      %s200 = scalar_select %p197, %s198, %s199
      %p203 = pneg %p197
      %p204 = scmp.eq.s32.totalorder %s20, 7
      %p205 = por %p203, %p204
      %p206 = scmp.ne.s32.totalorder %s198, %s201
      %p207 = scmp.eq.s32.totalorder %s20, 0
      %p208 = por %p206, %p207
      %p209 = scmp.ne.s32.totalorder %s198, %s201
      %p210 = scmp.eq.s32.totalorder %s25, 7
      %p211 = por %p209, %p210
      %p212 = scmp.ne.s32.totalorder %s201, %s202
      %p213 = scmp.eq.s32.totalorder %s25, 0
      %p214 = por %p212, %p213
      %p215 = scmp.ne.s32.totalorder %s201, %s202
      %p216 = scmp.eq.s32.totalorder %s26, 7
      %p217 = por %p215, %p216
      %p219 = scmp.ne.s32.totalorder %s202, %s218
      %p220 = scmp.eq.s32.totalorder %s26, 0
      %p221 = por %p219, %p220
      %s222 = ssub.s32 %s28, %s35
      %p223 = scmp.eq.s32.totalorder %s222, 0
      %s225 = sadd.s32 %s224, 1
      %s226 = scalar_select %p223, %s224, %s225
      %p229 = pneg %p223
      %p230 = scmp.eq.s32.totalorder %s20, 7
      %p231 = por %p229, %p230
      %p232 = scmp.ne.s32.totalorder %s224, %s227
      %p233 = scmp.eq.s32.totalorder %s20, 0
      %p234 = por %p232, %p233
      %p235 = scmp.ne.s32.totalorder %s224, %s227
      %p236 = scmp.eq.s32.totalorder %s25, 7
      %p237 = por %p235, %p236
      %p238 = scmp.ne.s32.totalorder %s227, %s228
      %p239 = scmp.eq.s32.totalorder %s25, 0
      %p240 = por %p238, %p239
      %p241 = scmp.ne.s32.totalorder %s227, %s228
      %p242 = scmp.eq.s32.totalorder %s26, 7
      %p243 = por %p241, %p242
      %p245 = scmp.ne.s32.totalorder %s228, %s244
      %p246 = scmp.eq.s32.totalorder %s26, 0
      %p247 = por %p245, %p246
      %s248 = ssub.s32 %s28, %s35
      %p249 = scmp.eq.s32.totalorder %s248, 0
      %s251 = sadd.s32 %s250, 1
      %s252 = scalar_select %p249, %s250, %s251
      %p255 = pneg %p249
      %p256 = scmp.eq.s32.totalorder %s20, 7
      %p257 = por %p255, %p256
      %p258 = scmp.ne.s32.totalorder %s250, %s253
      %p259 = scmp.eq.s32.totalorder %s20, 0
      %p260 = por %p258, %p259
      %p261 = scmp.ne.s32.totalorder %s250, %s253
      %p262 = scmp.eq.s32.totalorder %s25, 7
      %p263 = por %p261, %p262
      %p264 = scmp.ne.s32.totalorder %s253, %s254
      %p265 = scmp.eq.s32.totalorder %s25, 0
      %p266 = por %p264, %p265
      %p267 = scmp.ne.s32.totalorder %s253, %s254
      %p268 = scmp.eq.s32.totalorder %s26, 7
      %p269 = por %p267, %p268
      %p271 = scmp.ne.s32.totalorder %s254, %s270
      %p272 = scmp.eq.s32.totalorder %s26, 0
      %p273 = por %p271, %p272
      %s274 = ssub.s32 %s28, %s35
      %p275 = scmp.eq.s32.totalorder %s274, 0
      %s277 = sadd.s32 %s276, 1
      %s278 = scalar_select %p275, %s276, %s277
      %p281 = pneg %p275
      %p282 = scmp.eq.s32.totalorder %s20, 7
      %p283 = por %p281, %p282
      %p284 = scmp.ne.s32.totalorder %s276, %s279
      %p285 = scmp.eq.s32.totalorder %s20, 0
      %p286 = por %p284, %p285
      %p287 = scmp.ne.s32.totalorder %s276, %s279
      %p288 = scmp.eq.s32.totalorder %s25, 7
      %p289 = por %p287, %p288
      %p290 = scmp.ne.s32.totalorder %s279, %s280
      %p291 = scmp.eq.s32.totalorder %s25, 0
      %p292 = por %p290, %p291
      %p293 = scmp.ne.s32.totalorder %s279, %s280
      %p294 = scmp.eq.s32.totalorder %s26, 7
      %p295 = por %p293, %p294
      %p297 = scmp.ne.s32.totalorder %s280, %s296
      %p298 = scmp.eq.s32.totalorder %s26, 0
      %p299 = por %p297, %p298
      %s301 = sadd.s32 %s300, 1
      %p304 = scmp.eq.s32.totalorder %s20, 7
      %p305 = scmp.ne.s32.totalorder %s300, %s302
      %p306 = scmp.eq.s32.totalorder %s20, 0
      %p307 = por %p305, %p306
      %p308 = scmp.ne.s32.totalorder %s300, %s302
      %p309 = scmp.eq.s32.totalorder %s25, 7
      %p310 = por %p308, %p309
      %p311 = scmp.ne.s32.totalorder %s302, %s303
      %p312 = scmp.eq.s32.totalorder %s25, 0
      %p313 = por %p311, %p312
      %p314 = scmp.ne.s32.totalorder %s302, %s303
      %p315 = scmp.eq.s32.totalorder %s26, 7
      %p316 = por %p314, %p315
      %p318 = scmp.ne.s32.totalorder %s303, %s317
      %p319 = scmp.eq.s32.totalorder %s26, 0
      %p320 = por %p318, %p319
      %s321 = ssub.s32 %s27, %s39
      %p322 = scmp.eq.s32.totalorder %s321, 0
      %s324 = sadd.s32 %s323, 1
      %s325 = scalar_select %p322, %s323, %s324
      %p328 = pneg %p322
      %p329 = scmp.eq.s32.totalorder %s20, 7
      %p330 = por %p328, %p329
      %p331 = scmp.ne.s32.totalorder %s323, %s326
      %p332 = scmp.eq.s32.totalorder %s20, 0
      %p333 = por %p331, %p332
      %p334 = scmp.ne.s32.totalorder %s323, %s326
      %p335 = scmp.eq.s32.totalorder %s25, 7
      %p336 = por %p334, %p335
      %p337 = scmp.ne.s32.totalorder %s326, %s327
      %p338 = scmp.eq.s32.totalorder %s25, 0
      %p339 = por %p337, %p338
      %p340 = scmp.ne.s32.totalorder %s326, %s327
      %p341 = scmp.eq.s32.totalorder %s26, 7
      %p342 = por %p340, %p341
      %p344 = scmp.ne.s32.totalorder %s327, %s343
      %p345 = scmp.eq.s32.totalorder %s26, 0
      %p346 = por %p344, %p345
      %p347 = scmp.le.s32.totalorder 1, %s20
      %p348 = scmp.lt.s32.totalorder %s20, 9
      %p349 = pnand %p347, %p348
      %p350 = pneg %p349
      // Predicated region
      $region9: #{tpu_custom_call.1} parent=5 // pred_check
        _
      $region10: #{tpu_custom_call.1} parent=5 // pred_check_branch
        %352 = sbr.rel (%p349) target = $region12
      $region11: #{tpu_custom_call.1} parent=5 // pred_region
        %s353 = ssub.s32 %s20, 1
        // Predicated region
        $region13: #{tpu_custom_call.1} parent=11 // pred_check
          %p354 = pneg %p313
        $region14: #{tpu_custom_call.1} parent=11 // pred_check_branch
          %356 = sbr.rel (%p354) target = $region16
        $region15: #{tpu_custom_call.1} parent=11 // pred_region
          _
        $region16: #{tpu_custom_call.1} parent=11 // pred_fallthru
          _
      $region12: #{tpu_custom_call.1} parent=5 // pred_fallthru
        _
      %p357 = scmp.lt.s32.totalorder %s20, 8
      // Predicated region
      $region17: #{tpu_custom_call.1} parent=5 // pred_check
        %p358 = pneg %p357
      $region18: #{tpu_custom_call.1} parent=5 // pred_check_branch
        %360 = sbr.rel (%p358) target = $region20
      $region19: #{tpu_custom_call.1} parent=5 // pred_region
        // Predicated region
        $region21: #{tpu_custom_call.1} parent=19 // pred_check
          %p361 = pneg %p52
        $region22: #{tpu_custom_call.1} parent=19 // pred_check_branch
          %363 = sbr.rel (%p361) target = $region24
        $region23: #{tpu_custom_call.1} parent=19 // pred_region
          %p364 = scmp.lt.s32.totalorder %s27, 1
          %s365 = scalar_select %p364, %s27, 1
          %s366 = smul.addr %s365, 8
          %s367 = scalar_lea.vmem %s0, %s366
        $region24: #{tpu_custom_call.1} parent=19 // pred_fallthru
          _
        // Predicated region
        $region25: #{tpu_custom_call.1} parent=19 // pred_check
          %p368 = pneg %p78
        $region26: #{tpu_custom_call.1} parent=19 // pred_check_branch
          %370 = sbr.rel (%p368) target = $region28
        $region27: #{tpu_custom_call.1} parent=19 // pred_region
          %p371 = scmp.lt.s32.totalorder %s27, 1
          %s372 = scalar_select %p371, %s27, 1
          %s373 = smul.addr %s372, 8
          %s374 = scalar_lea.vmem %s1, %s373
        $region28: #{tpu_custom_call.1} parent=19 // pred_fallthru
          _
        // Predicated region
        $region29: #{tpu_custom_call.1} parent=19 // pred_check
          %p375 = pneg %p104
        $region30: #{tpu_custom_call.1} parent=19 // pred_check_branch
          %377 = sbr.rel (%p375) target = $region32
        $region31: #{tpu_custom_call.1} parent=19 // pred_region
          %p378 = scmp.lt.s32.totalorder %s27, 1
          %s379 = scalar_select %p378, %s27, 1
          %s380 = smul.addr %s379, 8
          %s381 = scalar_lea.vmem %s2, %s380
        $region32: #{tpu_custom_call.1} parent=19 // pred_fallthru
          _
        // Predicated region
        $region33: #{tpu_custom_call.1} parent=19 // pred_check
          %p382 = pneg %p130
        $region34: #{tpu_custom_call.1} parent=19 // pred_check_branch
          %384 = sbr.rel (%p382) target = $region36
        $region35: #{tpu_custom_call.1} parent=19 // pred_region
          %p385 = scmp.lt.s32.totalorder %s28, 3
          %s386 = scalar_select %p385, %s28, 3
          %s387 = smul.addr %s386, 4
          %s388 = smul.addr %s387, 8
          %s389 = scalar_lea.vmem %s3, %s388
        $region36: #{tpu_custom_call.1} parent=19 // pred_fallthru
          _
        // Predicated region
        $region37: #{tpu_custom_call.1} parent=19 // pred_check
          %p390 = pneg %p156
        $region38: #{tpu_custom_call.1} parent=19 // pred_check_branch
          %392 = sbr.rel (%p390) target = $region40
        $region39: #{tpu_custom_call.1} parent=19 // pred_region
          %p393 = scmp.lt.s32.totalorder %s28, 3
          %s394 = scalar_select %p393, %s28, 3
          %s395 = scalar_lea.vmem %s4, %s394
        $region40: #{tpu_custom_call.1} parent=19 // pred_fallthru
          _
        // Predicated region
        $region41: #{tpu_custom_call.1} parent=19 // pred_check
          %p396 = pneg %p182
        $region42: #{tpu_custom_call.1} parent=19 // pred_check_branch
          %398 = sbr.rel (%p396) target = $region44
        $region43: #{tpu_custom_call.1} parent=19 // pred_region
          %p399 = scmp.lt.s32.totalorder %s28, 3
          %s400 = scalar_select %p399, %s28, 3
          %s401 = smul.addr %s400, 4
          %s402 = smul.addr %s401, 8
          %s403 = scalar_lea.vmem %s5, %s402
        $region44: #{tpu_custom_call.1} parent=19 // pred_fallthru
          _
        // Predicated region
        $region45: #{tpu_custom_call.1} parent=19 // pred_check
          %p404 = pneg %p208
        $region46: #{tpu_custom_call.1} parent=19 // pred_check_branch
          %406 = sbr.rel (%p404) target = $region48
        $region47: #{tpu_custom_call.1} parent=19 // pred_region
          %p407 = scmp.lt.s32.totalorder %s28, 3
          %s408 = scalar_select %p407, %s28, 3
          %s409 = scalar_lea.vmem %s6, %s408
        $region48: #{tpu_custom_call.1} parent=19 // pred_fallthru
          _
        // Predicated region
        $region49: #{tpu_custom_call.1} parent=19 // pred_check
          %p410 = pneg %p234
        $region50: #{tpu_custom_call.1} parent=19 // pred_check_branch
          %412 = sbr.rel (%p410) target = $region52
        $region51: #{tpu_custom_call.1} parent=19 // pred_region
          %p413 = scmp.lt.s32.totalorder %s28, 3
          %s414 = scalar_select %p413, %s28, 3
          %s415 = smul.addr %s414, 4
          %s416 = smul.addr %s415, 8
          %s417 = scalar_lea.vmem %s7, %s416
        $region52: #{tpu_custom_call.1} parent=19 // pred_fallthru
          _
        // Predicated region
        $region53: #{tpu_custom_call.1} parent=19 // pred_check
          %p418 = pneg %p260
        $region54: #{tpu_custom_call.1} parent=19 // pred_check_branch
          %420 = sbr.rel (%p418) target = $region56
        $region55: #{tpu_custom_call.1} parent=19 // pred_region
          %p421 = scmp.lt.s32.totalorder %s28, 3
          %s422 = scalar_select %p421, %s28, 3
          %s423 = scalar_lea.vmem %s8, %s422
        $region56: #{tpu_custom_call.1} parent=19 // pred_fallthru
          _
        // Predicated region
        $region57: #{tpu_custom_call.1} parent=19 // pred_check
          %p424 = pneg %p286
        $region58: #{tpu_custom_call.1} parent=19 // pred_check_branch
          %426 = sbr.rel (%p424) target = $region60
        $region59: #{tpu_custom_call.1} parent=19 // pred_region
          %p427 = scmp.lt.s32.totalorder %s28, 3
          %s428 = scalar_select %p427, %s28, 3
          %s429 = smul.addr %s428, 8
          %s430 = scalar_lea.vmem %s9, %s429
        $region60: #{tpu_custom_call.1} parent=19 // pred_fallthru
          _
      $region20: #{tpu_custom_call.1} parent=5 // pred_fallthru
        _
      %p431 = scmp.le.s32.totalorder 1, %s20
      %p432 = scmp.lt.s32.totalorder %s20, 9
      %p433 = pnand %p431, %p432
      %p434 = pneg %p433
      // Predicated region
      $region61: #{tpu_custom_call.1} parent=5 // pred_check
        _
      $region62: #{tpu_custom_call.1} parent=5 // pred_check_branch
        %436 = sbr.rel (%p433) target = $region64
      $region63: #{tpu_custom_call.1} parent=5 // pred_region
        %s437 = ssub.s32 %s20, 1
        %p438 = scmp.lt.s32.totalorder %s29, 1
        %s439 = scalar_select %p438, %s29, 1
        %s440 = smul.addr %s439, 8
        %s441 = scalar_lea.vmem %s0, %s440
        %p442 = pneg %p58
        %p443 = pneg %p55
        %p444 = scmp.lt.s32.totalorder %s29, 1
        %s445 = scalar_select %p444, %s29, 1
        %s446 = smul.addr %s445, 8
        %s447 = scalar_lea.vmem %s1, %s446
        %p448 = pneg %p84
        %p449 = pneg %p81
        %p450 = scmp.lt.s32.totalorder %s29, 1
        %s451 = scalar_select %p450, %s29, 1
        %s452 = smul.addr %s451, 8
        %s453 = scalar_lea.vmem %s2, %s452
        %p454 = pneg %p110
        %p455 = pneg %p107
        %p456 = scmp.lt.s32.totalorder %s30, 3
        %s457 = scalar_select %p456, %s30, 3
        %s458 = smul.addr %s457, 4
        %s459 = smul.addr %s458, 8
        %s460 = scalar_lea.vmem %s3, %s459
        %p461 = pneg %p136
        %p462 = pneg %p133
        %p463 = scmp.lt.s32.totalorder %s30, 3
        %s464 = scalar_select %p463, %s30, 3
        %s465 = scalar_lea.vmem %s4, %s464
        %p466 = pneg %p162
        %p467 = pneg %p159
        %p468 = scmp.lt.s32.totalorder %s30, 3
        %s469 = scalar_select %p468, %s30, 3
        %s470 = smul.addr %s469, 4
        %s471 = smul.addr %s470, 8
        %s472 = scalar_lea.vmem %s5, %s471
        %p473 = pneg %p188
        %p474 = pneg %p185
        %p475 = scmp.lt.s32.totalorder %s30, 3
        %s476 = scalar_select %p475, %s30, 3
        %s477 = scalar_lea.vmem %s6, %s476
        %p478 = pneg %p214
        %p479 = pneg %p211
        %p480 = scmp.lt.s32.totalorder %s30, 3
        %s481 = scalar_select %p480, %s30, 3
        %s482 = smul.addr %s481, 4
        %s483 = smul.addr %s482, 8
        %s484 = scalar_lea.vmem %s7, %s483
        %p485 = pneg %p240
        %p486 = pneg %p237
        %p487 = scmp.lt.s32.totalorder %s30, 3
        %s488 = scalar_select %p487, %s30, 3
        %s489 = scalar_lea.vmem %s8, %s488
        %p490 = pneg %p266
        %p491 = pneg %p263
        %p492 = scmp.lt.s32.totalorder %s30, 3
        %s493 = scalar_select %p492, %s30, 3
        %s494 = smul.addr %s493, 8
        %s495 = scalar_lea.vmem %s9, %s494
        %p496 = pneg %p292
        %p497 = pneg %p289
        %p498 = pneg %p313
        %p499 = pneg %p310
        %p500 = pneg %p339
        %p501 = pneg %p336
        %s502 = sand.u32 %s326, 1
        %s503 = scalar_lea.sflag [#allocation4], %s502
        %s504 = sand.u32 %s326, 1
        %s505 = smul.addr %s504, 8
        %s506 = scalar_lea.vmem [#allocation3], %s505
        %p507 = scmp.lt.s32.totalorder %s29, 1
        %s508 = scalar_select %p507, %s29, 1
        %s509 = smul.addr %s508, 8
        %s510 = scalar_lea.vmem %s0, %s509
        %p511 = scmp.lt.s32.totalorder %s29, 1
        %s512 = scalar_select %p511, %s29, 1
        %s513 = smul.addr %s512, 8
        %s514 = scalar_lea.vmem %s1, %s513
        %p515 = scmp.lt.s32.totalorder %s29, 1
        %s516 = scalar_select %p515, %s29, 1
        %s517 = smul.addr %s516, 8
        %s518 = scalar_lea.vmem %s2, %s517
        %p519 = scmp.lt.s32.totalorder %s30, 3
        %s520 = scalar_select %p519, %s30, 3
        %s521 = smul.addr %s520, 4
        %s522 = smul.addr %s521, 8
        %s523 = scalar_lea.vmem %s3, %s522
        %p524 = scmp.lt.s32.totalorder %s30, 3
        %s525 = scalar_select %p524, %s30, 3
        %s526 = scalar_lea.vmem %s4, %s525
        %p527 = scmp.lt.s32.totalorder %s30, 3
        %s528 = scalar_select %p527, %s30, 3
        %s529 = smul.addr %s528, 4
        %s530 = smul.addr %s529, 8
        %s531 = scalar_lea.vmem %s5, %s530
        %p532 = scmp.lt.s32.totalorder %s30, 3
        %s533 = scalar_select %p532, %s30, 3
        %s534 = scalar_lea.vmem %s6, %s533
        %p535 = scmp.lt.s32.totalorder %s30, 3
        %s536 = scalar_select %p535, %s30, 3
        %s537 = smul.addr %s536, 4
        %s538 = smul.addr %s537, 8
        %s539 = scalar_lea.vmem %s7, %s538
        %p540 = scmp.lt.s32.totalorder %s30, 3
        %s541 = scalar_select %p540, %s30, 3
        %s542 = scalar_lea.vmem %s8, %s541
        %p543 = scmp.lt.s32.totalorder %s30, 3
        %s544 = scalar_select %p543, %s30, 3
        %s545 = smul.addr %s544, 8
        %s546 = scalar_lea.vmem %s9, %s545
        %v547 = vld [vmem:[%s510] sm:$0xff]
        %v548 = vld [vmem:[%s514] sm:$0xff]
        %v549 = vld [vmem:[%s518] sm:$0xff]
        %v550 = vld [vmem:[%s523] sm:$0xff]
        %v551 = vld [vmem:[%s523 + $0x8] sm:$0xff]
        %v552 = vld [vmem:[%s523 + $0x10] sm:$0xff]
        %v553 = vld [vmem:[%s523 + $0x18] sm:$0xff]
        %v554 = vld [vmem:[%s526] sm:$0x1]
        %v556 = vperm.slane %v554, 0
        %vm558 = vcmask 261120
        %v560 = vsel %vm558, %v547, 0
        %562 = vmatpush.msra.mxu0 0.0
        %563 = vmatpush.msra.mxu0 0.0
        %564 = vmatpush.msra.mxu0 0.0
        %565 = vmatpush.msra.mxu0 0.0
        %566 = vmatpush.msra.mxu0 0.0
        %567 = vmatpush.msra.mxu0 0.0
        %568 = vmatpush.msra.mxu0 0.0
        %569 = vmatpush.msra.mxu0 0.0
        %570 = vmatpush.msra.mxu0 0.0
        %571 = vmatpush.msra.mxu0 0.0
        %572 = vmatpush.msra.mxu0 0.0
        %573 = vmatpush.msra.mxu0 0.0
        %574 = vmatpush.msra.mxu0 %v553
        %575 = vmatpush.msra.mxu0 %v552
        %576 = vmatpush.msra.mxu0 %v551
        %577 = vmatpush.msra.mxu0 %v550
        %578 = vmatmul.f32.gmra.mxu0 %v560
        %v579 = vpop.f32.mrf.mxu0
        %v580 = vadd.f32 %v556, %v579
        %581 = vdwg.mxu0
        %v582 = vld [vmem:[%s531] sm:$0xff]
        %v583 = vld [vmem:[%s531 + $0x8] sm:$0xff]
        %v584 = vld [vmem:[%s531 + $0x10] sm:$0xff]
        %v585 = vld [vmem:[%s531 + $0x18] sm:$0xff]
        %v586 = vld [vmem:[%s534] sm:$0x1]
        %v588 = vperm.slane %v586, 0
        %v591 = vsel %vm558, %v548, 0
        %593 = vmatpush.msra.mxu0 0.0
        %594 = vmatpush.msra.mxu0 0.0
        %595 = vmatpush.msra.mxu0 0.0
        %596 = vmatpush.msra.mxu0 0.0
        %597 = vmatpush.msra.mxu0 0.0
        %598 = vmatpush.msra.mxu0 0.0
        %599 = vmatpush.msra.mxu0 0.0
        %600 = vmatpush.msra.mxu0 0.0
        %601 = vmatpush.msra.mxu0 0.0
        %602 = vmatpush.msra.mxu0 0.0
        %603 = vmatpush.msra.mxu0 0.0
        %604 = vmatpush.msra.mxu0 0.0
        %605 = vmatpush.msra.mxu0 %v585
        %606 = vmatpush.msra.mxu0 %v584
        %607 = vmatpush.msra.mxu0 %v583
        %608 = vmatpush.msra.mxu0 %v582
        %609 = vmatmul.f32.gmra.mxu0 %v591
        %v610 = vpop.f32.mrf.mxu0
        %v611 = vadd.f32 %v588, %v610
        %612 = vdwg.mxu0
        %v613 = vld [vmem:[%s539] sm:$0xff]
        %v614 = vld [vmem:[%s539 + $0x8] sm:$0xff]
        %v615 = vld [vmem:[%s539 + $0x10] sm:$0xff]
        %v616 = vld [vmem:[%s539 + $0x18] sm:$0xff]
        %v617 = vld [vmem:[%s542] sm:$0x1]
        %v619 = vperm.slane %v617, 0
        %v622 = vsel %vm558, %v549, 0
        %624 = vmatpush.msra.mxu0 0.0
        %625 = vmatpush.msra.mxu0 0.0
        %626 = vmatpush.msra.mxu0 0.0
        %627 = vmatpush.msra.mxu0 0.0
        %628 = vmatpush.msra.mxu0 0.0
        %629 = vmatpush.msra.mxu0 0.0
        %630 = vmatpush.msra.mxu0 0.0
        %631 = vmatpush.msra.mxu0 0.0
        %632 = vmatpush.msra.mxu0 0.0
        %633 = vmatpush.msra.mxu0 0.0
        %634 = vmatpush.msra.mxu0 0.0
        %635 = vmatpush.msra.mxu0 0.0
        %636 = vmatpush.msra.mxu0 %v616
        %637 = vmatpush.msra.mxu0 %v615
        %638 = vmatpush.msra.mxu0 %v614
        %639 = vmatpush.msra.mxu0 %v613
        %640 = vmatmul.f32.gmra.mxu0 %v622
        %v641 = vpop.f32.mrf.mxu0
        %v642 = vadd.f32 %v619, %v641
        %643 = vdwg.mxu0
        %v644 = vld [vmem:[%s546] sm:$0xff]
        %vm645 = vcmask 64512
        %v647 = vsel %vm645, %v580, 0
        %v650 = vsel %vm645, %v611, 0
        %652 = vmatpush.xpose.msra.mxu0 0.0
        %653 = vmatpush.xpose.msra.mxu0 0.0
        %654 = vmatpush.xpose.msra.mxu0 0.0
        %655 = vmatpush.xpose.msra.mxu0 0.0
        %656 = vmatpush.xpose.msra.mxu0 0.0
        %657 = vmatpush.xpose.msra.mxu0 0.0
        %658 = vmatpush.xpose.msra.mxu0 0.0
        %659 = vmatpush.xpose.msra.mxu0 0.0
        %660 = vmatpush.xpose.msra.mxu0 0.0
        %661 = vmatpush.xpose.msra.mxu0 0.0
        %662 = vmatpush.xpose.msra.mxu0 0.0
        %663 = vmatpush.xpose.msra.mxu0 0.0
        %664 = vmatpush.xpose.msra.mxu0 0.0
        %665 = vmatpush.xpose.msra.mxu0 0.0
        %666 = vmatpush.xpose.msra.mxu0 0.0
        %667 = vmatpush.xpose.msra.mxu0 %v650
        %668 = vmatmul.f32.gmra.mxu0 %v647
        %v669 = vpop.f32.mrf.mxu0
        %v670 = vadd.f32 0.0, %v669
        %671 = vdwg.mxu0
        %v672 = vsel %vm645, %v670, -inf
        %673 = vmax.xlane.f32.xlu0 %v672
        %v674 = vpop.xlane.xlu0 %673
        %v675 = vsub.f32 %v670, %v674
        %v676 = vmul.f32 %v675, 1.442695
        %v677 = vpow.pop %v676
        %v679 = vsel %vm645, %v677, 0
        %681 = vmatpush.msra.mxu0 0.0
        %682 = vmatpush.msra.mxu0 0.0
        %683 = vmatpush.msra.mxu0 0.0
        %684 = vmatpush.msra.mxu0 0.0
        %685 = vmatpush.msra.mxu0 0.0
        %686 = vmatpush.msra.mxu0 0.0
        %687 = vmatpush.msra.mxu0 0.0
        %688 = vmatpush.msra.mxu0 0.0
        %689 = vmatpush.msra.mxu0 0.0
        %690 = vmatpush.msra.mxu0 0.0
        %691 = vmatpush.msra.mxu0 0.0
        %692 = vmatpush.msra.mxu0 0.0
        %693 = vmatpush.msra.mxu0 0.0
        %694 = vmatpush.msra.mxu0 0.0
        %695 = vmatpush.msra.mxu0 0.0
        %696 = vmatpush.msra.mxu0 %v642
        %697 = vmatmul.f32.gmra.mxu0 %v679
        %v698 = vpop.f32.mrf.mxu0
        %v699 = vadd.f32 0.0, %v698
        %700 = vdwg.mxu0
        %v701 = vsel %vm645, %v677, 0.0
        %702 = vadd.xlane.f32.xlu0 %v701
        %v703 = vpop.xlane.xlu0 %702
        %v704 = vrcp.pop %v703
        %v705 = vmul.f32 %v699, %v704
        %v707 = vsel %vm645, %v705, 0
        %709 = vmatpush.msra.mxu0 0.0
        %710 = vmatpush.msra.mxu0 0.0
        %711 = vmatpush.msra.mxu0 0.0
        %712 = vmatpush.msra.mxu0 0.0
        %713 = vmatpush.msra.mxu0 0.0
        %714 = vmatpush.msra.mxu0 0.0
        %715 = vmatpush.msra.mxu0 0.0
        %716 = vmatpush.msra.mxu0 0.0
        %717 = vmatpush.msra.mxu0 0.0
        %718 = vmatpush.msra.mxu0 0.0
        %719 = vmatpush.msra.mxu0 0.0
        %720 = vmatpush.msra.mxu0 0.0
        %721 = vmatpush.msra.mxu0 0.0
        %722 = vmatpush.msra.mxu0 0.0
        %723 = vmatpush.msra.mxu0 0.0
        %724 = vmatpush.msra.mxu0 %v644
        %725 = vmatmul.f32.gmra.mxu0 %v707
        %v726 = vpop.f32.mrf.mxu0
        %v727 = vadd.f32 0.0, %v726
        %728 = vdwg.mxu0
        %p729 = scmp.eq.s32.totalorder %s30, 0
        // Predicated region
        $region65: #{tpu_custom_call.1} parent=63 // pred_check
          %p730 = pneg %p729
        $region66: #{tpu_custom_call.1} parent=63 // pred_check_branch
          %732 = sbr.rel (%p730) target = $region68
        $region67: #{tpu_custom_call.1} parent=63 // pred_region
          %733 = vst.msk [vmem:[#allocation2] sm:$0xff] %vm558, 0.0
        $region68: #{tpu_custom_call.1} parent=63 // pred_fallthru
          _
        %v734 = vld [vmem:[#allocation2] sm:$0xff]
        %v735 = vadd.f32 %v734, %v727
        %736 = vst.msk [vmem:[#allocation2] sm:$0xff] %vm558, %v735
        %p737 = scmp.eq.s32.totalorder %s30, 3
        // Predicated region
        $region69: #{tpu_custom_call.1} parent=63 // pred_check
          %p738 = pneg %p737
        $region70: #{tpu_custom_call.1} parent=63 // pred_check_branch
          %740 = sbr.rel (%p738) target = $region72
        $region71: #{tpu_custom_call.1} parent=63 // pred_region
          %v741 = vld [vmem:[#allocation2] sm:$0xff]
          %v742 = vld [vmem:[%s10] sm:$0x1]
          %v744 = vperm.slane %v742, 0
          %v746 = vadd.f32 %v741, %v744
          %747 = vst.msk [vmem:[%s506] sm:$0xff] %vm558, %v746
        $region72: #{tpu_custom_call.1} parent=63 // pred_fallthru
          _
        %s748 = sand.u32 %s326, 1
        %s749 = scalar_lea.sflag [#allocation4], %s748
        %s750 = sand.u32 %s326, 1
        %s751 = smul.addr %s750, 8
        %s752 = scalar_lea.vmem [#allocation3], %s751
        // Predicated region
        $region73: #{tpu_custom_call.1} parent=63 // pred_check
          %p753 = pneg %p336
        $region74: #{tpu_custom_call.1} parent=63 // pred_check_branch
          %755 = sbr.rel (%p753) target = $region76
        $region75: #{tpu_custom_call.1} parent=63 // pred_region
          %757 = vsyncadd %s749, 0
          %s758 = smul.addr %s29, 8
          %s759 = scalar_lea.hbm %s11, %s758
          %s761 = sshll.u32 %s752, 4
          %s762 = int_to_ptr.vmem [resolvable:$true] %s761
          %s763 = sshll.u32 %s759, 4
          %s764 = int_to_ptr.hbm [resolvable:$true] %s763
          %766 = dma.vmem_to_hbm [thread:$0]  %s762, 128, %s764, %s749
        $region76: #{tpu_custom_call.1} parent=63 // pred_fallthru
          _
      $region64: #{tpu_custom_call.1} parent=5 // pred_fallthru
        _
      %p767 = scmp.le.s32.totalorder 2, %s20
      // Predicated region
      $region77: #{tpu_custom_call.1} parent=5 // pred_check
        %p768 = pneg %p767
      $region78: #{tpu_custom_call.1} parent=5 // pred_check_branch
        %770 = sbr.rel (%p768) target = $region80
      $region79: #{tpu_custom_call.1} parent=5 // pred_region
        %s771 = ssub.s32 %s20, 2
        // Predicated region
        $region81: #{tpu_custom_call.1} parent=79 // pred_check
          %p772 = pneg %p342
        $region82: #{tpu_custom_call.1} parent=79 // pred_check_branch
          %774 = sbr.rel (%p772) target = $region84
        $region83: #{tpu_custom_call.1} parent=79 // pred_region
          %s775 = sand.u32 %s327, 1
          %s776 = scalar_lea.sflag [#allocation4], %s775
          %s777 = sand.u32 %s327, 1
          %s778 = smul.addr %s777, 8
          %s779 = scalar_lea.vmem [#allocation3], %s778
          %781 = dma.done %s776, 128
        $region84: #{tpu_custom_call.1} parent=79 // pred_fallthru
          _
      $region80: #{tpu_custom_call.1} parent=5 // pred_fallthru
        _
    $region6: #{tpu_custom_call.1} parent=1 // loop_footer
      %s24 = sadd.s32 1, %s20
    $region7: #{tpu_custom_call.1} parent=1 // loop_footer_branch
      %19 = sbr.rel target = $region3
    $region8: #{tpu_custom_call.1} parent=1 // loop_exit
      _
    %782 = vsyncpa [#allocation4], 1
    %s783 = scalar_lea.sflag [#allocation4], 1
    %784 = vsyncpa %s783, 1

</llo_original>
